<compile_context>
chip_gen: v6e
topology: v6e:2x2x1
jax: 0.10.0
libtpu: 0.0.40
codegen_flags: <defaults>
</compile_context>

<pallas_src>
import functools

import jax
import jax.numpy as jnp
from jax.experimental import pallas as pl
from jax.experimental.pallas import tpu as pltpu

LEAKY_SLOPE = 0.01  # nn.LeakyReLU default negative_slope
BN_EPS = 1e-5       # nn.BatchNorm1d default eps
LANE = 128
SUBLANE = 8


def _round_up(n, m):
    return ((n + m - 1) // m) * m


def _vmem_capacity_bytes():
    """Per-TensorCore VMEM capacity; conservative 64 MiB (v7x) fallback."""
    try:
        cap = int(pltpu.get_tpu_info().vmem_capacity_bytes)
        if cap > 0:
            return cap
    except Exception:
        pass
    return 64 * 1024 * 1024


def _auto_tiles(B, Np, wbytes, budget, tb, tn):
    """Pick (tb, tn): prefer a fully VMEM-resident folded weight (tn == Np) with the
    largest batch tile <= 512; otherwise feature-tile the weight, preferring tn that
    is a multiple of 256 (full MXU width on v6e/v7x)."""
    tb_hi = min(512, _round_up(B, SUBLANE))

    def tb_cands(hi):
        t, out = _round_up(hi, SUBLANE), []
        while True:
            out.append(t)
            if t <= SUBLANE:
                return out
            t = max(SUBLANE, _round_up(t // 2, SUBLANE))

    def tn_cands():
        divs = [t for t in range(Np, 0, -LANE) if Np % t == 0]
        return [t for t in divs if t % 256 == 0] + [t for t in divs if t % 256 != 0]

    def fits_resident(tb_):   # weight single-buffered (pl.Buffered(1)); x/out double-buffered
        return Np * Np * wbytes + 4 * tb_ * Np * 4 + tb_ * Np * 4 <= budget

    def fits_tiled(tb_, tn_):  # double-buffered weight tile + x row block + out tile
        return (2 * Np * tn_ * wbytes + 2 * tb_ * Np * 4 + 3 * tb_ * tn_ * 4) <= budget

    if tn is not None:
        assert tn % LANE == 0 and Np % tn == 0, "tn must be a multiple of 128 dividing padded N"
    if tb is not None:
        tb = _round_up(tb, SUBLANE)

    if tb is not None and tn is not None:
        return tb, tn
    if tn is not None:                               # tb free
        for t in tb_cands(tb_hi):
            if (tn == Np and fits_resident(t)) or fits_tiled(t, tn):
                return t, tn
        return SUBLANE, tn
    if tb is not None:                               # tn free
        if fits_resident(tb):
            return tb, Np
        for n in tn_cands():
            if fits_tiled(tb, n):
                return tb, n
        return tb, LANE
    # both free: resident weight with a decent batch tile, else feature-tiled, else
    # resident with a tiny batch tile as last resort.
    for t in tb_cands(tb_hi):
        if t >= min(128, tb_hi) and fits_resident(t):
            return t, Np
    for t in tb_cands(tb_hi):
        for n in tn_cands():
            if fits_tiled(t, n):
                return t, n
    for t in tb_cands(tb_hi):
        if fits_resident(t):
            return t, Np
    return SUBLANE, LANE


def _kernel_single(x_ref, w_ref, shift_ref, o_ref):
    """Resident-weight path (tn == padded N): the x block is both the matmul input
    and the residual."""
    x = x_ref[...]                                                # (tb, Np) f32
    y = jnp.dot(x.astype(w_ref.dtype), w_ref[...],
                preferred_element_type=jnp.float32)               # MXU, (tb, Np)
    y = y + shift_ref[...]                                        # folded Linear bias + BN
    y = y + x                                                     # residual (f32)
    y = jnp.where(y > 0, y, LEAKY_SLOPE * y)                      # LeakyReLU
    o_ref[...] = y.astype(o_ref.dtype)                            # Dropout (eval) = identity


def _kernel_tiled(x_ref, w_ref, shift_ref, o_ref, *, feat_axis):
    """Feature-tiled weight path. The residual is sliced from the already-resident
    (tb, Np) x row block — no second x input stream."""
    tn = o_ref.shape[-1]
    x = x_ref[...]                                                # (tb, Np) f32, full K
    y = jnp.dot(x.astype(w_ref.dtype), w_ref[...],
                preferred_element_type=jnp.float32)               # (tb, tn)
    y = y + shift_ref[...]
    start = pl.multiple_of(pl.program_id(feat_axis) * tn, tn)     # lane-aligned offset
    y = y + x_ref[:, pl.ds(start, tn)]                            # residual slice (f32)
    y = jnp.where(y > 0, y, LEAKY_SLOPE * y)
    o_ref[...] = y.astype(o_ref.dtype)


def residual_block(x, W, b, gamma, beta, running_mean, running_var,
                   eps=BN_EPS, *, tb=None, tn=None, compute_dtype=jnp.bfloat16,
                   vmem_limit_bytes=None):
    """Eval-mode ResidualBlock forward.

    x: (B, N). W: (N, N) (nn.Linear weight), b/gamma/beta/running_mean/running_var: (N,).
    compute_dtype: dtype of the MXU operands (folded weight + in-kernel x copy); the BN
    shift, residual add and LeakyReLU epilogue stay f32.  Pass jnp.float32 for
    bit-tight numerics (more MXU passes, 2x weight HBM traffic).
    tb / tn: optional batch / output-feature tile overrides (auto-selected otherwise).
    """
    B, N = x.shape
    out_dtype = x.dtype

    # ---- host-side folding: Linear bias + BN running stats -> one weight + one shift ----
    scale = gamma.astype(jnp.float32) / jnp.sqrt(running_var.astype(jnp.float32) + eps)
    shift = (beta.astype(jnp.float32) - running_mean.astype(jnp.float32) * scale
             + b.astype(jnp.float32) * scale)
    w_fold = W.T.astype(jnp.float32) * scale[None, :]

    Np = _round_up(max(N, LANE), LANE)               # lane-dense feature dim
    wbytes = jnp.dtype(compute_dtype).itemsize

    vmem_cap = _vmem_capacity_bytes()
    tb, tn = _auto_tiles(B, Np, wbytes, int(0.7 * vmem_cap), tb, tn)
    tb = min(tb, _round_up(B, SUBLANE))              # no oversized batch tile
    nb = pl.cdiv(B, tb)                              # ragged B: boundary tile masked by
    nf = Np // tn                                    # Pallas; no host batch pad / slice

    # Feature padding only (needed for lane density / zero K columns).
    if Np != N:
        x_in = jnp.zeros((B, Np), jnp.float32).at[:, :N].set(x.astype(jnp.float32))
        w_p = (jnp.zeros((Np, Np), jnp.float32).at[:N, :N].set(w_fold)
               .astype(compute_dtype))
        shift_p = jnp.zeros((1, Np), jnp.float32).at[:, :N].set(shift[None, :])
    else:
        x_in = x.astype(jnp.float32)
        w_p = w_fold.astype(compute_dtype)
        shift_p = shift[None, :]

    # VMEM footprint -> scoped limit (v7x 64 MiB/TC vs 128 MiB on v5e/v6e).
    if nf == 1:
        footprint = Np * Np * wbytes + 5 * tb * Np * 4 + 2 * Np * 4
    else:
        footprint = 2 * Np * tn * wbytes + 2 * tb * Np * 4 + 3 * tb * tn * 4 + 2 * tn * 4
    if vmem_limit_bytes is None:
        vmem_limit_bytes = int(min(int(0.9 * vmem_cap), max(2 * footprint, 32 << 20)))

    # Advisory cost hint for XLA's scheduler.
    x_bytes, w_total = B * Np * 4, Np * Np * wbytes
    if nf == 1:
        bytes_accessed = 2 * x_bytes + w_total + Np * 4
    else:
        bytes_accessed = (min(nf * x_bytes + w_total, x_bytes + nb * w_total)
                          + x_bytes + Np * 4)
    cost = pl.CostEstimate(flops=2 * B * Np * Np, transcendentals=0,
                           bytes_accessed=int(bytes_accessed))

    compiler_params = pltpu.CompilerParams(
        dimension_semantics=("parallel",) if nf == 1 else ("parallel", "parallel"),
        vmem_limit_bytes=vmem_limit_bytes)

    if nf == 1:
        def call_single(const_mode):
            kw = {} if const_mode is None else {"pipeline_mode": const_mode}
            return pl.pallas_call(
                _kernel_single,
                out_shape=jax.ShapeDtypeStruct((B, Np), out_dtype),
                grid_spec=pltpu.PrefetchScalarGridSpec(
                    num_scalar_prefetch=0,
                    grid=(nb,),
                    in_specs=[
                        pl.BlockSpec((tb, Np), lambda i: (i, 0)),        # x rows (stream)
                        pl.BlockSpec((Np, Np), lambda i: (0, 0), **kw),  # folded weight
                        pl.BlockSpec((1, Np), lambda i: (0, 0), **kw),   # folded shift
                    ],
                    out_specs=pl.BlockSpec((tb, Np), lambda i: (i, 0)),
                ),
                compiler_params=compiler_params,
                cost_estimate=cost,
            )(x_in, w_p, shift_p)

        try:
            # Constant-index weight/shift are DMA'd exactly once: a single buffer halves
            # their VMEM reservation (matters for large `node` on v7x's 64 MiB/TC).
            out = call_single(pl.Buffered(1))
        except Exception:
            # pipeline_mode / Buffered(1) unsupported on this jax version -> default.
            out = call_single(None)
    else:
        # Grid order picked to minimize redundant HBM traffic: feature-outer re-reads
        # x nf times; batch-outer re-reads the weight nb times.
        feat_outer = nf * x_bytes + w_total <= x_bytes + nb * w_total
        if feat_outer:
            grid, feat_axis = (nf, nb), 0
            x_map, w_map = (lambda j, i: (i, 0)), (lambda j, i: (0, j))
            s_map, o_map = (lambda j, i: (0, j)), (lambda j, i: (i, j))
        else:
            grid, feat_axis = (nb, nf), 1
            x_map, w_map = (lambda i, j: (i, 0)), (lambda i, j: (0, j))
            s_map, o_map = (lambda i, j: (0, j)), (lambda i, j: (i, j))
        out = pl.pallas_call(
            functools.partial(_kernel_tiled, feat_axis=feat_axis),
            out_shape=jax.ShapeDtypeStruct((B, Np), out_dtype),
            grid_spec=pltpu.PrefetchScalarGridSpec(
                num_scalar_prefetch=0,
                grid=grid,
                in_specs=[
                    pl.BlockSpec((tb, Np), x_map),   # x rows: matmul K + residual source
                    pl.BlockSpec((Np, tn), w_map),   # folded weight tile
                    pl.BlockSpec((1, tn), s_map),    # folded shift tile
                ],
                out_specs=pl.BlockSpec((tb, tn), o_map),
            ),
            compiler_params=compiler_params,
            cost_estimate=cost,
        )(x_in, w_p, shift_p)

    out = out[:, :N] if Np != N else out
    return out.astype(out_dtype)


def residual_block_ref(x, W, b, gamma, beta, running_mean, running_var, eps=BN_EPS):
    """Pure f32 reference matching the PyTorch module in eval mode."""
    y = x @ W.T + b
    y = (y - running_mean) / jnp.sqrt(running_var + eps) * gamma + beta
    y = y + x
    return jnp.where(y > 0, y, LEAKY_SLOPE * y)


def residual_block_ref_matched(x, W, b, gamma, beta, running_mean, running_var,
                               eps=BN_EPS, weight_dtype=jnp.bfloat16):
    """Reference mirroring the kernel numerics (bf16 MXU operands, f32 accumulation,
    f32 shift/residual/epilogue) for tight tolerance checks."""
    scale = gamma / jnp.sqrt(running_var + eps)
    shift = beta - running_mean * scale + b * scale
    w_fold = (W.T * scale[None, :]).astype(weight_dtype).astype(jnp.float32)
    xm = x.astype(weight_dtype).astype(jnp.float32)
    y = xm @ w_fold + shift
    y = y + x
    return jnp.where(y > 0, y, LEAKY_SLOPE * y)


if __name__ == "__main__":
    def make_inputs(key, B, NODE):
        kx, kw, kb, kg, kbt, km, kv = jax.random.split(key, 7)
        x = jax.random.normal(kx, (B, NODE), dtype=jnp.float32)
        W = jax.random.normal(kw, (NODE, NODE), dtype=jnp.float32) * 0.1
        b = jax.random.normal(kb, (NODE,), dtype=jnp.float32) * 0.1
        gamma = 1.0 + 0.1 * jax.random.normal(kg, (NODE,), dtype=jnp.float32)
        beta = 0.1 * jax.random.normal(kbt, (NODE,), dtype=jnp.float32)
        mean = 0.1 * jax.random.normal(km, (NODE,), dtype=jnp.float32)
        var = jnp.abs(jax.random.normal(kv, (NODE,), dtype=jnp.float32)) + 0.5
        return x, W, b, gamma, beta, mean, var

    k1, k2, k3 = jax.random.split(jax.random.PRNGKey(0), 3)

    # 1) Module-sized shapes (batch=8, node=32) with f32 MXU operands: tight check of
    #    the BN/bias folding + resident-weight path (lane-padded to 128, 1 grid step).
    a1 = make_inputs(k1, 8, 32)
    o1 = jax.block_until_ready(residual_block(*a1, compute_dtype=jnp.float32))
    assert o1.shape == (8, 32) and o1.dtype == jnp.float32
    assert jnp.allclose(o1, residual_block_ref(*a1), atol=1e-4, rtol=1e-4)

    # 2) Same shapes with the default bf16 MXU operands (f32 residual / epilogue).
    o2 = jax.block_until_ready(residual_block(*a1))
    assert jnp.allclose(o2, residual_block_ref_matched(*a1), atol=2e-3, rtol=2e-3)
    assert jnp.allclose(o2, residual_block_ref(*a1), atol=3e-2, rtol=3e-2)

    # 3) Ragged batch + non-multiple-of-128 node: feature pad, masked boundary batch
    #    tile (no host-side batch pad/slice), feature-tiled weight (tn=256),
    #    feature-outer grid order, in-kernel residual slice.
    a2 = make_inputs(k2, 136, 500)
    o3 = jax.block_until_ready(residual_block(*a2, tb=64, tn=256))
    assert o3.shape == (136, 500) and o3.dtype == jnp.float32
    assert jnp.allclose(o3, residual_block_ref_matched(*a2), atol=2e-3, rtol=2e-3)

    # 4) Large batch / small node: exercises the batch-outer grid order (re-reading
    #    the small weight is cheaper than re-reading x) and the 512-row auto batch tile.
    a3 = make_inputs(k3, 1024, 256)
    o4 = jax.block_until_ready(residual_block(*a3, tn=128))
    assert o4.shape == (1024, 256) and o4.dtype == jnp.float32
    assert jnp.allclose(o4, residual_block_ref_matched(*a3), atol=2e-3, rtol=2e-3)

    print("KERNEL_OK")
</pallas_src>

<mosaic_0001>
module attributes {stable_mosaic.version = 11 : i64} {
  func.func @_kernel_single(%arg0: i32, %arg1: memref<8x128xf32, #tpu.memory_space<vmem>>, %arg2: memref<128x128xf32, #tpu.memory_space<vmem>>, %arg3: memref<1x128xf32, #tpu.memory_space<vmem>>, %arg4: memref<8x128xf32, #tpu.memory_space<vmem>>) attributes {dimension_semantics = [#tpu.dimension_semantics<parallel>], iteration_bounds = array<i64: 1>, scalar_prefetch = 0 : i64, scratch_operands = 0 : i64, tpu.core_type = #tpu.core_type<tc>, window_params = [{transform_indices = @transform_0, window_bounds = array<i64: 8, 128>}, {pipeline_mode = #tpu.pipeline_mode<synchronous>, transform_indices = @transform_1, window_bounds = array<i64: 128, 128>}, {pipeline_mode = #tpu.pipeline_mode<synchronous>, transform_indices = @transform_2, window_bounds = array<i64: 1, 128>}, {transform_indices = @transform_3, window_bounds = array<i64: 8, 128>}]} {
    %c0 = arith.constant 0 : index
    %c0_0 = arith.constant 0 : index
    %0 = vector.load %arg1[%c0, %c0_0] : memref<8x128xf32, #tpu.memory_space<vmem>>, vector<8x128xf32>
    %c0_1 = arith.constant 0 : index
    %c0_2 = arith.constant 0 : index
    %1 = vector.load %arg2[%c0_1, %c0_2] : memref<128x128xf32, #tpu.memory_space<vmem>>, vector<128x128xf32>
    %cst = arith.constant dense<0.000000e+00> : vector<8x128xf32>
    %2 = tpu.matmul %0, %1, %cst {dimension_numbers = #tpu.dot_dimension_numbers<[1], [0], [0], [1], [0, 0, 1, 1], [], []>} : vector<8x128xf32>, vector<128x128xf32>, vector<8x128xf32> -> vector<8x128xf32>
    %c0_3 = arith.constant 0 : index
    %c0_4 = arith.constant 0 : index
    %3 = vector.load %arg3[%c0_3, %c0_4] : memref<1x128xf32, #tpu.memory_space<vmem>>, vector<1x128xf32>
    %4 = vector.broadcast %3 : vector<1x128xf32> to vector<8x128xf32>
    %5 = arith.addf %2, %4 : vector<8x128xf32>
    %6 = arith.addf %5, %0 : vector<8x128xf32>
    %cst_5 = arith.constant 0.000000e+00 : f32
    %7 = vector.broadcast %cst_5 : f32 to vector<8x128xf32>
    %8 = arith.cmpf ogt, %6, %7 : vector<8x128xf32>
    %cst_6 = arith.constant 0.00999999977 : f32
    %9 = vector.broadcast %cst_6 : f32 to vector<8x128xf32>
    %10 = arith.mulf %9, %6 : vector<8x128xf32>
    %11 = arith.select %8, %6, %10 : vector<8x128xi1>, vector<8x128xf32>
    %c0_7 = arith.constant 0 : index
    %c0_8 = arith.constant 0 : index
    %12 = vector.load %arg4[%c0_7, %c0_8] : memref<8x128xf32, #tpu.memory_space<vmem>>, vector<8x128xf32>
    tpu.vector_store %arg4[%c0_7, %c0_8], %11 {strides = array<i32>} : memref<8x128xf32, #tpu.memory_space<vmem>>, vector<8x128xf32>,
    return
  }
  func.func @transform_0(%arg0: i32) -> (i32, i32) {
    %c0_i32 = arith.constant 0 : i32
    %c0_i32_0 = arith.constant 0 : i32
    return %arg0, %c0_i32 : i32, i32
  }
  func.func @transform_1(%arg0: i32) -> (i32, i32) {
    %c0_i32 = arith.constant 0 : i32
    %c0_i32_0 = arith.constant 0 : i32
    %c0_i32_1 = arith.constant 0 : i32
    return %c0_i32, %c0_i32_0 : i32, i32
  }
  func.func @transform_2(%arg0: i32) -> (i32, i32) {
    %c0_i32 = arith.constant 0 : i32
    %c0_i32_0 = arith.constant 0 : i32
    %c0_i32_1 = arith.constant 0 : i32
    return %c0_i32, %c0_i32_0 : i32, i32
  }
  func.func @transform_3(%arg0: i32) -> (i32, i32) {
    %c0_i32 = arith.constant 0 : i32
    %c0_i32_0 = arith.constant 0 : i32
    return %arg0, %c0_i32 : i32, i32
  }
}

module attributes {stable_mosaic.version = 11 : i64} {
  func.func @_kernel_single(%arg0: i32, %arg1: memref<8x128xf32, #tpu.memory_space<vmem>>, %arg2: memref<128x128xf32, #tpu.memory_space<vmem>>, %arg3: memref<1x128xf32, #tpu.memory_space<vmem>>, %arg4: memref<8x128xf32, #tpu.memory_space<vmem>>) attributes {dimension_semantics = [#tpu.dimension_semantics<parallel>], iteration_bounds = array<i64: 1>, scalar_prefetch = 0 : i64, scratch_operands = 0 : i64, tpu.core_type = #tpu.core_type<tc>, window_params = [{transform_indices = @transform_0, window_bounds = array<i64: 8, 128>}, {pipeline_mode = #tpu.pipeline_mode<synchronous>, transform_indices = @transform_1, window_bounds = array<i64: 128, 128>}, {pipeline_mode = #tpu.pipeline_mode<synchronous>, transform_indices = @transform_2, window_bounds = array<i64: 1, 128>}, {transform_indices = @transform_3, window_bounds = array<i64: 8, 128>}]} {
    %c0 = arith.constant 0 : index
    %c0_0 = arith.constant 0 : index
    %0 = vector.load %arg1[%c0, %c0_0] : memref<8x128xf32, #tpu.memory_space<vmem>>, vector<8x128xf32>
    %c0_1 = arith.constant 0 : index
    %c0_2 = arith.constant 0 : index
    %1 = vector.load %arg2[%c0_1, %c0_2] : memref<128x128xf32, #tpu.memory_space<vmem>>, vector<128x128xf32>
    %cst = arith.constant dense<0.000000e+00> : vector<8x128xf32>
    %2 = tpu.matmul %0, %1, %cst {dimension_numbers = #tpu.dot_dimension_numbers<[1], [0], [0], [1], [0, 0, 1, 1], [], []>} : vector<8x128xf32>, vector<128x128xf32>, vector<8x128xf32> -> vector<8x128xf32>
    %c0_3 = arith.constant 0 : index
    %c0_4 = arith.constant 0 : index
    %3 = vector.load %arg3[%c0_3, %c0_4] : memref<1x128xf32, #tpu.memory_space<vmem>>, vector<1x128xf32>
    %4 = vector.broadcast %3 : vector<1x128xf32> to vector<8x128xf32>
    %5 = arith.addf %2, %4 : vector<8x128xf32>
    %6 = arith.addf %5, %0 : vector<8x128xf32>
    %cst_5 = arith.constant 0.000000e+00 : f32
    %7 = vector.broadcast %cst_5 : f32 to vector<8x128xf32>
    %8 = arith.cmpf ogt, %6, %7 : vector<8x128xf32>
    %cst_6 = arith.constant 0.00999999977 : f32
    %9 = vector.broadcast %cst_6 : f32 to vector<8x128xf32>
    %10 = arith.mulf %9, %6 : vector<8x128xf32>
    %11 = arith.select %8, %6, %10 : vector<8x128xi1>, vector<8x128xf32>
    %c0_7 = arith.constant 0 : index
    %c0_8 = arith.constant 0 : index
    %12 = vector.load %arg4[%c0_7, %c0_8] : memref<8x128xf32, #tpu.memory_space<vmem>>, vector<8x128xf32>
    tpu.vector_store %arg4[%c0_7, %c0_8], %11 {strides = array<i32>} : memref<8x128xf32, #tpu.memory_space<vmem>>, vector<8x128xf32>,
    return
  }
  func.func @transform_0(%arg0: i32) -> (i32, i32) {
    %c0_i32 = arith.constant 0 : i32
    %c0_i32_0 = arith.constant 0 : i32
    return %arg0, %c0_i32 : i32, i32
  }
  func.func @transform_1(%arg0: i32) -> (i32, i32) {
    %c0_i32 = arith.constant 0 : i32
    %c0_i32_0 = arith.constant 0 : i32
    %c0_i32_1 = arith.constant 0 : i32
    return %c0_i32, %c0_i32_0 : i32, i32
  }
  func.func @transform_2(%arg0: i32) -> (i32, i32) {
    %c0_i32 = arith.constant 0 : i32
    %c0_i32_0 = arith.constant 0 : i32
    %c0_i32_1 = arith.constant 0 : i32
    return %c0_i32, %c0_i32_0 : i32, i32
  }
  func.func @transform_3(%arg0: i32) -> (i32, i32) {
    %c0_i32 = arith.constant 0 : i32
    %c0_i32_0 = arith.constant 0 : i32
    return %arg0, %c0_i32 : i32, i32
  }
}

</mosaic_0001>

<llo_original>
// kernel: tpu_custom_call.1
$region0: #{tpu_custom_call.1}
  #allocation0 [shape = 'u32[]', space=smem, size = 0x4, offset = 0x4, fixed_abs, tag = 'smem constant byte address 0x4 - core index']
  #allocation1 [shape = 'u32[144,128]{1,0:T(1,128)}', space=vmem, size = 0x12000, scoped, tag = 'internal scratch']
  %s0 = inlined_call_operand.hbm [shape: f32[8,128], index: 0, kind: input, shape index: {}]
  %s1 = inlined_call_operand.hbm [shape: f32[128,128], index: 1, kind: input, shape index: {}]
  %s2 = inlined_call_operand.vmem [shape: f32[1,128], index: 2, kind: input, shape index: {}]
  %s3 = inlined_call_operand.hbm [shape: f32[8,128], index: 3, kind: output, shape index: {}]
  %s4 = sld [smem:[#allocation0]]
  $region30: #{tpu_custom_call.1} parent=0
    _
  %s6 = ssub.s32 1, %s4
  %s7 = scalar_select 0, %s6, %s4
  $region1: #{tpu_custom_call.1} parent=0
    #allocation2 [shape = 'u8[4096]{0}', space=vmem, size = 0x1000, scoped, tag = 'input window, operand 0, single buffered']
    #allocation3 [shape = 's32[1]{0}', space=sflag, size = 0x4, scoped, tag = 'scoped memory for tpu_custom_call.1']
    #allocation4 [shape = 's32[1]{0}', space=sflag, size = 0x4, scoped, tag = 'scoped memory for tpu_custom_call.1']
    #allocation5 [shape = 'u8[65536]{0}', space=vmem, size = 0x10000, scoped, tag = 'input window, operand 1, single buffered']
    #allocation6 [shape = 's32[1]{0}', space=sflag, size = 0x4, scoped, tag = 'scoped memory for tpu_custom_call.1']
    #allocation7 [shape = 'u8[4096]{0}', space=vmem, size = 0x1000, scoped, tag = 'output window, operand 0, single buffered']
    %8 = vsyncpa [#allocation3], 0
    %9 = vsyncpa [#allocation6], 0
    %10 = vsyncpa [#allocation4], 0
    // Predicated region
    $region2: #{tpu_custom_call.1} parent=1 // pred_check
      _
    $region3: #{tpu_custom_call.1} parent=1 // pred_check_branch
      %12 = sbr.rel (0) target = $region5
    $region4: #{tpu_custom_call.1} parent=1 // pred_region
      %s14 = ssub.s32 128, 128
      %15 = vsyncadd [#allocation3], %s14
      %s17 = sshll.u32 [#allocation2], 4
      %s18 = int_to_ptr.vmem [resolvable:$true] %s17
      %20 = dma.hbm_to_vmem [thread:$0]  %s0, 128, %s18, [#allocation3]
    $region5: #{tpu_custom_call.1} parent=1 // pred_fallthru
      _
    // Predicated region
    $region6: #{tpu_custom_call.1} parent=1 // pred_check
      _
    $region7: #{tpu_custom_call.1} parent=1 // pred_check_branch
      %22 = sbr.rel (0) target = $region9
    $region8: #{tpu_custom_call.1} parent=1 // pred_region
      %s24 = ssub.s32 2048, 2048
      %25 = vsyncadd [#allocation6], %s24
      %s26 = sshll.u32 [#allocation5], 4
      %s27 = int_to_ptr.vmem [resolvable:$true] %s26
      %32 = dma.hbm_to_vmem [thread:$0]  %s1, 2048, %s27, [#allocation6], 128, 128, 8
    $region9: #{tpu_custom_call.1} parent=1 // pred_fallthru
      _
    // Predicated region
    $region10: #{tpu_custom_call.1} parent=1 // pred_check
      _
    $region11: #{tpu_custom_call.1} parent=1 // pred_check_branch
      %34 = sbr.rel (0) target = $region13
    $region12: #{tpu_custom_call.1} parent=1 // pred_region
      _
    $region13: #{tpu_custom_call.1} parent=1 // pred_fallthru
      _
    // Predicated region
    $region14: #{tpu_custom_call.1} parent=1 // pred_check
      _
    $region15: #{tpu_custom_call.1} parent=1 // pred_check_branch
      %36 = sbr.rel (0) target = $region17
    $region16: #{tpu_custom_call.1} parent=1 // pred_region
      %37 = dma.done [#allocation3], 128
    $region17: #{tpu_custom_call.1} parent=1 // pred_fallthru
      _
    // Predicated region
    $region18: #{tpu_custom_call.1} parent=1 // pred_check
      _
    $region19: #{tpu_custom_call.1} parent=1 // pred_check_branch
      %39 = sbr.rel (0) target = $region21
    $region20: #{tpu_custom_call.1} parent=1 // pred_region
      %40 = dma.done [#allocation6], 2048
    $region21: #{tpu_custom_call.1} parent=1 // pred_fallthru
      _
    %v41 = vld [vmem:[#allocation2] sm:$0xff]
    %v42 = vld [vmem:[#allocation5] sm:$0xff]
    %v43 = vld [vmem:[#allocation5 + $0x8] sm:$0xff]
    %v44 = vld [vmem:[#allocation5 + $0x10] sm:$0xff]
    %v45 = vld [vmem:[#allocation5 + $0x18] sm:$0xff]
    %v46 = vld [vmem:[#allocation5 + $0x20] sm:$0xff]
    %v47 = vld [vmem:[#allocation5 + $0x28] sm:$0xff]
    %v48 = vld [vmem:[#allocation5 + $0x30] sm:$0xff]
    %v49 = vld [vmem:[#allocation5 + $0x38] sm:$0xff]
    %v50 = vld [vmem:[#allocation5 + $0x40] sm:$0xff]
    %v51 = vld [vmem:[#allocation5 + $0x48] sm:$0xff]
    %v52 = vld [vmem:[#allocation5 + $0x50] sm:$0xff]
    %v53 = vld [vmem:[#allocation5 + $0x58] sm:$0xff]
    %v54 = vld [vmem:[#allocation5 + $0x60] sm:$0xff]
    %v55 = vld [vmem:[#allocation5 + $0x68] sm:$0xff]
    %v56 = vld [vmem:[#allocation5 + $0x70] sm:$0xff]
    %v57 = vld [vmem:[#allocation5 + $0x78] sm:$0xff]
    %v58 = vld [vmem:[%s2] sm:$0x1]
    %v60 = vlaneseq
    %v61 = vshrl.u32 %v60, 7
    %v62 = vsub.s32 0, %v61
    %v63 = vrot.slane %v58, %v62
    %65 = vmatprep.subr.mxu0 0.0
    %66 = vmatpush1.msra.mxu0 %v57
    %67 = vmatprep.subr.mxu0 0.0
    %68 = vmatpush1.msra.mxu0 %v56
    %69 = vmatprep.subr.mxu0 0.0
    %70 = vmatpush1.msra.mxu0 %v55
    %71 = vmatprep.subr.mxu0 0.0
    %72 = vmatpush1.msra.mxu0 %v54
    %73 = vmatprep.subr.mxu0 0.0
    %74 = vmatpush1.msra.mxu0 %v53
    %75 = vmatprep.subr.mxu0 0.0
    %76 = vmatpush1.msra.mxu0 %v52
    %77 = vmatprep.subr.mxu0 0.0
    %78 = vmatpush1.msra.mxu0 %v51
    %79 = vmatprep.subr.mxu0 0.0
    %80 = vmatpush1.msra.mxu0 %v50
    %81 = vmatprep.subr.mxu0 0.0
    %82 = vmatpush1.msra.mxu0 %v49
    %83 = vmatprep.subr.mxu0 0.0
    %84 = vmatpush1.msra.mxu0 %v48
    %85 = vmatprep.subr.mxu0 0.0
    %86 = vmatpush1.msra.mxu0 %v47
    %87 = vmatprep.subr.mxu0 0.0
    %88 = vmatpush1.msra.mxu0 %v46
    %89 = vmatprep.subr.mxu0 0.0
    %90 = vmatpush1.msra.mxu0 %v45
    %91 = vmatprep.subr.mxu0 0.0
    %92 = vmatpush1.msra.mxu0 %v44
    %93 = vmatprep.subr.mxu0 0.0
    %94 = vmatpush1.msra.mxu0 %v43
    %95 = vmatprep.subr.mxu0 0.0
    %96 = vmatpush1.msra.mxu0 %v42
    %97 = vmatprep.subr.mxu0 0.0
    %98 = vmatpush2.msra.mxu0 0.0
    %99 = vmatprep.subr.mxu0 0.0
    %100 = vmatpush2.msra.mxu0 0.0
    %101 = vmatprep.subr.mxu0 0.0
    %102 = vmatpush2.msra.mxu0 0.0
    %103 = vmatprep.subr.mxu0 0.0
    %104 = vmatpush2.msra.mxu0 0.0
    %105 = vmatprep.subr.mxu0 0.0
    %106 = vmatpush2.msra.mxu0 0.0
    %107 = vmatprep.subr.mxu0 0.0
    %108 = vmatpush2.msra.mxu0 0.0
    %109 = vmatprep.subr.mxu0 0.0
    %110 = vmatpush2.msra.mxu0 0.0
    %111 = vmatprep.subr.mxu0 0.0
    %112 = vmatpush2.msra.mxu0 0.0
    %113 = vmatprep.subr.mxu0 0.0
    %114 = vmatpush2.msra.mxu0 0.0
    %115 = vmatprep.subr.mxu0 0.0
    %116 = vmatpush2.msra.mxu0 0.0
    %117 = vmatprep.subr.mxu0 0.0
    %118 = vmatpush2.msra.mxu0 0.0
    %119 = vmatprep.subr.mxu0 0.0
    %120 = vmatpush2.msra.mxu0 0.0
    %121 = vmatprep.subr.mxu0 0.0
    %122 = vmatpush2.msra.mxu0 0.0
    %123 = vmatprep.subr.mxu0 0.0
    %124 = vmatpush2.msra.mxu0 0.0
    %125 = vmatprep.subr.mxu0 0.0
    %126 = vmatpush2.msra.mxu0 0.0
    %127 = vmatprep.subr.mxu0 0.0
    %128 = vmatpush2.msra.mxu0 0.0
    %129 = vmatprep.mubr.f32.mxu0 0.0
    %130 = vmatmul.mubr.f32.gmra.mxu0 %v41
    %v131 = vpop.f32.mrf.mxu0
    %v132 = vadd.f32 %v63, %v131
    %v133 = vpop.f32.mrf.mxu0
    %134 = vdwg.mxu0
    %v135 = vadd.f32 %v132, %v41
    %vm136 = vcmp.gt.f32.partialorder %v135, 0.0
    %v137 = vmul.f32 %v135, 0.01
    %v138 = vsel %vm136, %v135, %v137
    %139 = vst [vmem:[#allocation7] sm:$0xff] %v138
    // Predicated region
    $region22: #{tpu_custom_call.1} parent=1 // pred_check
      _
    $region23: #{tpu_custom_call.1} parent=1 // pred_check_branch
      %141 = sbr.rel (0) target = $region25
    $region24: #{tpu_custom_call.1} parent=1 // pred_region
      %s143 = ssub.s32 128, 128
      %144 = vsyncadd [#allocation4], %s143
      %s146 = sshll.u32 [#allocation7], 4
      %s147 = int_to_ptr.vmem [resolvable:$true] %s146
      %149 = dma.vmem_to_hbm [thread:$0]  %s147, 128, %s3, [#allocation4]
    $region25: #{tpu_custom_call.1} parent=1 // pred_fallthru
      _
    // Predicated region
    $region26: #{tpu_custom_call.1} parent=1 // pred_check
      _
    $region27: #{tpu_custom_call.1} parent=1 // pred_check_branch
      %151 = sbr.rel (0) target = $region29
    $region28: #{tpu_custom_call.1} parent=1 // pred_region
      %152 = dma.done [#allocation4], 128
    $region29: #{tpu_custom_call.1} parent=1 // pred_fallthru
      _
    %153 = vsyncpa [#allocation3], 1
    %154 = vsyncpa [#allocation6], 1
    %155 = vsyncpa [#allocation4], 1

// kernel: tpu_custom_call.1
$region0: #{tpu_custom_call.1}
  #allocation0 [shape = 'u32[]', space=smem, size = 0x4, offset = 0x4, fixed_abs, tag = 'smem constant byte address 0x4 - core index']
  #allocation1 [shape = 'u32[144,128]{1,0:T(1,128)}', space=vmem, size = 0x12000, scoped, tag = 'internal scratch']
  %s0 = inlined_call_operand.hbm [shape: f32[8,128], index: 0, kind: input, shape index: {}]
  %s1 = inlined_call_operand.hbm [shape: f32[128,128], index: 1, kind: input, shape index: {}]
  %s2 = inlined_call_operand.vmem [shape: f32[1,128], index: 2, kind: input, shape index: {}]
  %s3 = inlined_call_operand.hbm [shape: f32[8,128], index: 3, kind: output, shape index: {}]
  %s4 = sld [smem:[#allocation0]]
  $region30: #{tpu_custom_call.1} parent=0
    _
  %s6 = ssub.s32 1, %s4
  %s7 = scalar_select 0, %s6, %s4
  $region1: #{tpu_custom_call.1} parent=0
    #allocation2 [shape = 'u8[4096]{0}', space=vmem, size = 0x1000, scoped, tag = 'input window, operand 0, single buffered']
    #allocation3 [shape = 's32[1]{0}', space=sflag, size = 0x4, scoped, tag = 'scoped memory for tpu_custom_call.1']
    #allocation4 [shape = 's32[1]{0}', space=sflag, size = 0x4, scoped, tag = 'scoped memory for tpu_custom_call.1']
    #allocation5 [shape = 'u8[65536]{0}', space=vmem, size = 0x10000, scoped, tag = 'input window, operand 1, single buffered']
    #allocation6 [shape = 's32[1]{0}', space=sflag, size = 0x4, scoped, tag = 'scoped memory for tpu_custom_call.1']
    #allocation7 [shape = 'u8[4096]{0}', space=vmem, size = 0x1000, scoped, tag = 'output window, operand 0, single buffered']
    %8 = vsyncpa [#allocation3], 0
    %9 = vsyncpa [#allocation6], 0
    %10 = vsyncpa [#allocation4], 0
    // Predicated region
    $region2: #{tpu_custom_call.1} parent=1 // pred_check
      _
    $region3: #{tpu_custom_call.1} parent=1 // pred_check_branch
      %12 = sbr.rel (0) target = $region5
    $region4: #{tpu_custom_call.1} parent=1 // pred_region
      %s14 = ssub.s32 128, 128
      %15 = vsyncadd [#allocation3], %s14
      %s17 = sshll.u32 [#allocation2], 4
      %s18 = int_to_ptr.vmem [resolvable:$true] %s17
      %20 = dma.hbm_to_vmem [thread:$0]  %s0, 128, %s18, [#allocation3]
    $region5: #{tpu_custom_call.1} parent=1 // pred_fallthru
      _
    // Predicated region
    $region6: #{tpu_custom_call.1} parent=1 // pred_check
      _
    $region7: #{tpu_custom_call.1} parent=1 // pred_check_branch
      %22 = sbr.rel (0) target = $region9
    $region8: #{tpu_custom_call.1} parent=1 // pred_region
      %s24 = ssub.s32 2048, 2048
      %25 = vsyncadd [#allocation6], %s24
      %s26 = sshll.u32 [#allocation5], 4
      %s27 = int_to_ptr.vmem [resolvable:$true] %s26
      %32 = dma.hbm_to_vmem [thread:$0]  %s1, 2048, %s27, [#allocation6], 128, 128, 8
    $region9: #{tpu_custom_call.1} parent=1 // pred_fallthru
      _
    // Predicated region
    $region10: #{tpu_custom_call.1} parent=1 // pred_check
      _
    $region11: #{tpu_custom_call.1} parent=1 // pred_check_branch
      %34 = sbr.rel (0) target = $region13
    $region12: #{tpu_custom_call.1} parent=1 // pred_region
      _
    $region13: #{tpu_custom_call.1} parent=1 // pred_fallthru
      _
    // Predicated region
    $region14: #{tpu_custom_call.1} parent=1 // pred_check
      _
    $region15: #{tpu_custom_call.1} parent=1 // pred_check_branch
      %36 = sbr.rel (0) target = $region17
    $region16: #{tpu_custom_call.1} parent=1 // pred_region
      %37 = dma.done [#allocation3], 128
    $region17: #{tpu_custom_call.1} parent=1 // pred_fallthru
      _
    // Predicated region
    $region18: #{tpu_custom_call.1} parent=1 // pred_check
      _
    $region19: #{tpu_custom_call.1} parent=1 // pred_check_branch
      %39 = sbr.rel (0) target = $region21
    $region20: #{tpu_custom_call.1} parent=1 // pred_region
      %40 = dma.done [#allocation6], 2048
    $region21: #{tpu_custom_call.1} parent=1 // pred_fallthru
      _
    %v41 = vld [vmem:[#allocation2] sm:$0xff]
    %v42 = vld [vmem:[#allocation5] sm:$0xff]
    %v43 = vld [vmem:[#allocation5 + $0x8] sm:$0xff]
    %v44 = vld [vmem:[#allocation5 + $0x10] sm:$0xff]
    %v45 = vld [vmem:[#allocation5 + $0x18] sm:$0xff]
    %v46 = vld [vmem:[#allocation5 + $0x20] sm:$0xff]
    %v47 = vld [vmem:[#allocation5 + $0x28] sm:$0xff]
    %v48 = vld [vmem:[#allocation5 + $0x30] sm:$0xff]
    %v49 = vld [vmem:[#allocation5 + $0x38] sm:$0xff]
    %v50 = vld [vmem:[#allocation5 + $0x40] sm:$0xff]
    %v51 = vld [vmem:[#allocation5 + $0x48] sm:$0xff]
    %v52 = vld [vmem:[#allocation5 + $0x50] sm:$0xff]
    %v53 = vld [vmem:[#allocation5 + $0x58] sm:$0xff]
    %v54 = vld [vmem:[#allocation5 + $0x60] sm:$0xff]
    %v55 = vld [vmem:[#allocation5 + $0x68] sm:$0xff]
    %v56 = vld [vmem:[#allocation5 + $0x70] sm:$0xff]
    %v57 = vld [vmem:[#allocation5 + $0x78] sm:$0xff]
    %v58 = vld [vmem:[%s2] sm:$0x1]
    %v60 = vlaneseq
    %v61 = vshrl.u32 %v60, 7
    %v62 = vsub.s32 0, %v61
    %v63 = vrot.slane %v58, %v62
    %65 = vmatprep.subr.mxu0 0.0
    %66 = vmatpush1.msra.mxu0 %v57
    %67 = vmatprep.subr.mxu0 0.0
    %68 = vmatpush1.msra.mxu0 %v56
    %69 = vmatprep.subr.mxu0 0.0
    %70 = vmatpush1.msra.mxu0 %v55
    %71 = vmatprep.subr.mxu0 0.0
    %72 = vmatpush1.msra.mxu0 %v54
    %73 = vmatprep.subr.mxu0 0.0
    %74 = vmatpush1.msra.mxu0 %v53
    %75 = vmatprep.subr.mxu0 0.0
    %76 = vmatpush1.msra.mxu0 %v52
    %77 = vmatprep.subr.mxu0 0.0
    %78 = vmatpush1.msra.mxu0 %v51
    %79 = vmatprep.subr.mxu0 0.0
    %80 = vmatpush1.msra.mxu0 %v50
    %81 = vmatprep.subr.mxu0 0.0
    %82 = vmatpush1.msra.mxu0 %v49
    %83 = vmatprep.subr.mxu0 0.0
    %84 = vmatpush1.msra.mxu0 %v48
    %85 = vmatprep.subr.mxu0 0.0
    %86 = vmatpush1.msra.mxu0 %v47
    %87 = vmatprep.subr.mxu0 0.0
    %88 = vmatpush1.msra.mxu0 %v46
    %89 = vmatprep.subr.mxu0 0.0
    %90 = vmatpush1.msra.mxu0 %v45
    %91 = vmatprep.subr.mxu0 0.0
    %92 = vmatpush1.msra.mxu0 %v44
    %93 = vmatprep.subr.mxu0 0.0
    %94 = vmatpush1.msra.mxu0 %v43
    %95 = vmatprep.subr.mxu0 0.0
    %96 = vmatpush1.msra.mxu0 %v42
    %97 = vmatprep.subr.mxu0 0.0
    %98 = vmatpush2.msra.mxu0 0.0
    %99 = vmatprep.subr.mxu0 0.0
    %100 = vmatpush2.msra.mxu0 0.0
    %101 = vmatprep.subr.mxu0 0.0
    %102 = vmatpush2.msra.mxu0 0.0
    %103 = vmatprep.subr.mxu0 0.0
    %104 = vmatpush2.msra.mxu0 0.0
    %105 = vmatprep.subr.mxu0 0.0
    %106 = vmatpush2.msra.mxu0 0.0
    %107 = vmatprep.subr.mxu0 0.0
    %108 = vmatpush2.msra.mxu0 0.0
    %109 = vmatprep.subr.mxu0 0.0
    %110 = vmatpush2.msra.mxu0 0.0
    %111 = vmatprep.subr.mxu0 0.0
    %112 = vmatpush2.msra.mxu0 0.0
    %113 = vmatprep.subr.mxu0 0.0
    %114 = vmatpush2.msra.mxu0 0.0
    %115 = vmatprep.subr.mxu0 0.0
    %116 = vmatpush2.msra.mxu0 0.0
    %117 = vmatprep.subr.mxu0 0.0
    %118 = vmatpush2.msra.mxu0 0.0
    %119 = vmatprep.subr.mxu0 0.0
    %120 = vmatpush2.msra.mxu0 0.0
    %121 = vmatprep.subr.mxu0 0.0
    %122 = vmatpush2.msra.mxu0 0.0
    %123 = vmatprep.subr.mxu0 0.0
    %124 = vmatpush2.msra.mxu0 0.0
    %125 = vmatprep.subr.mxu0 0.0
    %126 = vmatpush2.msra.mxu0 0.0
    %127 = vmatprep.subr.mxu0 0.0
    %128 = vmatpush2.msra.mxu0 0.0
    %129 = vmatprep.mubr.f32.mxu0 0.0
    %130 = vmatmul.mubr.f32.gmra.mxu0 %v41
    %v131 = vpop.f32.mrf.mxu0
    %v132 = vadd.f32 %v63, %v131
    %v133 = vpop.f32.mrf.mxu0
    %134 = vdwg.mxu0
    %v135 = vadd.f32 %v132, %v41
    %vm136 = vcmp.gt.f32.partialorder %v135, 0.0
    %v137 = vmul.f32 %v135, 0.01
    %v138 = vsel %vm136, %v135, %v137
    %139 = vst [vmem:[#allocation7] sm:$0xff] %v138
    // Predicated region
    $region22: #{tpu_custom_call.1} parent=1 // pred_check
      _
    $region23: #{tpu_custom_call.1} parent=1 // pred_check_branch
      %141 = sbr.rel (0) target = $region25
    $region24: #{tpu_custom_call.1} parent=1 // pred_region
      %s143 = ssub.s32 128, 128
      %144 = vsyncadd [#allocation4], %s143
      %s146 = sshll.u32 [#allocation7], 4
      %s147 = int_to_ptr.vmem [resolvable:$true] %s146
      %149 = dma.vmem_to_hbm [thread:$0]  %s147, 128, %s3, [#allocation4]
    $region25: #{tpu_custom_call.1} parent=1 // pred_fallthru
      _
    // Predicated region
    $region26: #{tpu_custom_call.1} parent=1 // pred_check
      _
    $region27: #{tpu_custom_call.1} parent=1 // pred_check_branch
      %151 = sbr.rel (0) target = $region29
    $region28: #{tpu_custom_call.1} parent=1 // pred_region
      %152 = dma.done [#allocation4], 128
    $region29: #{tpu_custom_call.1} parent=1 // pred_fallthru
      _
    %153 = vsyncpa [#allocation3], 1
    %154 = vsyncpa [#allocation6], 1
    %155 = vsyncpa [#allocation4], 1

</llo_original>
